<compile_context>
chip_gen: v7x
topology: tpu7x:2x2x1
jax: 0.10.0
libtpu: 0.0.40
codegen_flags: <defaults>
</compile_context>

<pallas_src>
import functools

import jax
import jax.numpy as jnp
from jax import lax
from jax.experimental import pallas as pl
from jax.experimental.pallas import tpu as pltpu


# ------------------------------- helpers -----------------------------------

def _round_up(x, m):
    return (x + m - 1) // m * m


def _row_tile(m, max_tm=512):
    """Row tile: whole M (rounded to the bf16 sublane tile) for small M,
    512 otherwise (amortizes the resident-weight fetch; fits v5e's 16 MiB
    scoped VMEM with double buffering)."""
    m16 = _round_up(m, 16)
    return m16 if m16 <= max_tm else max_tm


def _pad_rows(a, rows):
    r = a.shape[0]
    if r == rows:
        return a
    return jnp.pad(a, ((0, rows - r), (0, 0)))


# ----------------------------- Pallas kernels -------------------------------

def _fused_qkv_kernel(x_ref, wq_ref, wk_ref, wv_ref, b_ref,
                      q_ref, k_ref, v_ref):
    # x: (tm, K) bf16; w*: (K, C) bf16 (resident); b: (3, C) f32; out: (tm, C) bf16
    x = x_ref[...]
    b = b_ref[...].astype(jnp.float32)
    q_ref[...] = (jnp.dot(x, wq_ref[...], preferred_element_type=jnp.float32)
                  + b[0:1, :]).astype(q_ref.dtype)
    k_ref[...] = (jnp.dot(x, wk_ref[...], preferred_element_type=jnp.float32)
                  + b[1:2, :]).astype(k_ref.dtype)
    v_ref[...] = (jnp.dot(x, wv_ref[...], preferred_element_type=jnp.float32)
                  + b[2:3, :]).astype(v_ref.dtype)


def _linear_bias_kernel(x_ref, w_ref, b_ref, o_ref):
    # x: (tm, K) bf16; w: (K, Nout) bf16 (resident); b: (1, Nout) f32
    o_ref[...] = (jnp.dot(x_ref[...], w_ref[...],
                          preferred_element_type=jnp.float32)
                  + b_ref[...].astype(jnp.float32)).astype(o_ref.dtype)


def _make_attn_kernel(scale):
    def kernel(q_ref, k_ref, v_ref, o_ref):
        # q/k/v/o: (N, Dh) bf16 for one (batch, head) grid point.
        # Fold the softmax scale into q: N*Dh muls instead of N*N.
        q = (q_ref[...].astype(jnp.float32) * scale).astype(jnp.bfloat16)
        k = k_ref[...]
        v = v_ref[...]
        # q @ k^T without materializing a transpose: contract last dims.
        s = lax.dot_general(q, k, (((1,), (1,)), ((), ())),
                            preferred_element_type=jnp.float32)
        m = jnp.max(s, axis=-1, keepdims=True)          # softmax in f32
        p = jnp.exp(s - m)
        denom = jnp.sum(p, axis=-1, keepdims=True)
        p = p * pl.reciprocal(denom, approx=True)       # EUP slot (≈ free)
        ctx = jnp.dot(p.astype(v.dtype), v, preferred_element_type=jnp.float32)
        o_ref[...] = ctx.astype(o_ref.dtype)            # single lane-dense store
    return kernel


# ------------------------------ host wrappers -------------------------------

def _pallas_qkv_proj(x2d, wq, wk, wv, bias3):
    """x2d: (M, K) bf16; wq/wk/wv: (K, C) bf16; bias3: (3, C) f32 -> 3x (M, C) bf16."""
    M, K = x2d.shape
    C = wq.shape[1]
    tm = _row_tile(M)
    Mp = _round_up(M, tm)
    x_p = _pad_rows(x2d, Mp)

    grid = (Mp // tm,)
    x_spec = pl.BlockSpec((tm, K), lambda i: (i, 0))
    w_spec = pl.BlockSpec((K, C), lambda i: (0, 0))     # resident across M tiles
    b_spec = pl.BlockSpec((3, C), lambda i: (0, 0))     # resident
    o_spec = pl.BlockSpec((tm, C), lambda i: (i, 0))

    q, k, v = pl.pallas_call(
        _fused_qkv_kernel,
        out_shape=[jax.ShapeDtypeStruct((Mp, C), jnp.bfloat16)] * 3,
        grid=grid,
        in_specs=[x_spec, w_spec, w_spec, w_spec, b_spec],
        out_specs=[o_spec] * 3,
        compiler_params=pltpu.CompilerParams(
            dimension_semantics=("parallel",)),
        cost_estimate=pl.CostEstimate(
            flops=2 * Mp * K * C * 3,
            transcendentals=0,
            bytes_accessed=(Mp * K + 3 * K * C + 3 * Mp * C) * 2 + 3 * C * 4),
    )(x_p, wq, wk, wv, bias3)

    if Mp != M:
        q, k, v = q[:M], k[:M], v[:M]
    return q, k, v


def _pallas_linear_bias(x2d, w, bias, out_dtype):
    """x2d @ w + bias, resident weight, f32 accumulation."""
    M, K = x2d.shape
    Nout = w.shape[1]
    tm = _row_tile(M)
    Mp = _round_up(M, tm)
    x_p = _pad_rows(x2d, Mp)
    b2d = bias.reshape(1, Nout).astype(jnp.float32)

    grid = (Mp // tm,)
    out = pl.pallas_call(
        _linear_bias_kernel,
        out_shape=jax.ShapeDtypeStruct((Mp, Nout), out_dtype),
        grid=grid,
        in_specs=[pl.BlockSpec((tm, K), lambda i: (i, 0)),
                  pl.BlockSpec((K, Nout), lambda i: (0, 0)),   # resident
                  pl.BlockSpec((1, Nout), lambda i: (0, 0))],  # resident
        out_specs=pl.BlockSpec((tm, Nout), lambda i: (i, 0)),
        compiler_params=pltpu.CompilerParams(
            dimension_semantics=("parallel",)),
        cost_estimate=pl.CostEstimate(
            flops=2 * Mp * K * Nout,
            transcendentals=0,
            bytes_accessed=(Mp * K + K * Nout) * 2 + Mp * Nout * 4 + Nout * 4),
    )(x_p, w, b2d)

    if Mp != M:
        out = out[:M]
    return out


def _pallas_attention(q, k, v, scale):
    """q/k/v: (B, H, N, Dh) bf16 -> (B, H, N, Dh) bf16.  grid=(B, H), both parallel."""
    B, H, N, Dh = q.shape
    spec = pl.BlockSpec((None, None, N, Dh), lambda b, h: (b, h, 0, 0))
    return pl.pallas_call(
        _make_attn_kernel(scale),
        out_shape=jax.ShapeDtypeStruct((B, H, N, Dh), q.dtype),
        grid=(B, H),
        in_specs=[spec, spec, spec],
        out_specs=spec,
        compiler_params=pltpu.CompilerParams(
            dimension_semantics=("parallel", "parallel")),
        cost_estimate=pl.CostEstimate(
            flops=4 * B * H * N * N * Dh,
            transcendentals=B * H * N * N,
            bytes_accessed=4 * B * H * N * Dh * 2),
    )(q, k, v)


class AttentionPallas:
    """Mirrors models/Point_MAE.py::Attention (eval mode, dropout p=0)."""

    def __init__(self, dim, num_heads=8, qkv_bias=False, qk_scale=None, key=None):
        self.dim = dim
        self.num_heads = num_heads
        head_dim = dim // num_heads
        self.scale = qk_scale or head_dim ** (-0.5)
        self.qkv_bias = qkv_bias

        key = key if key is not None else jax.random.PRNGKey(0)
        k1, k2, k3, k4 = jax.random.split(key, 4)
        bound = 1.0 / (dim ** 0.5)
        # PyTorch nn.Linear stores (out, in); we keep (in, out) for x @ W.
        # Weights in bf16 (MXU native); biases in f32 (added to f32 accumulator).
        w_qkv = jax.random.uniform(k1, (dim, 3 * dim), jnp.float32, -bound, bound)
        self.w_q = w_qkv[:, :dim].astype(jnp.bfloat16)
        self.w_k = w_qkv[:, dim:2 * dim].astype(jnp.bfloat16)
        self.w_v = w_qkv[:, 2 * dim:].astype(jnp.bfloat16)
        if qkv_bias:
            self.b_qkv = jax.random.uniform(k2, (3, dim), jnp.float32, -bound, bound)
        else:
            self.b_qkv = jnp.zeros((3, dim), jnp.float32)   # identity add
        self.w_proj = jax.random.uniform(
            k3, (dim, dim), jnp.float32, -bound, bound).astype(jnp.bfloat16)
        self.b_proj = jax.random.uniform(k4, (dim,), jnp.float32, -bound, bound)

    def __call__(self, x):
        B, N, C = x.shape
        H = self.num_heads
        Dh = C // H
        x2d = x.reshape(B * N, C).astype(jnp.bfloat16)

        # 1) fused qkv projection -> three (B*N, C) bf16 arrays.
        q2d, k2d, v2d = _pallas_qkv_proj(x2d, self.w_q, self.w_k, self.w_v,
                                         self.b_qkv)

        # Head split (same permute as the PyTorch reference).  Heads become a
        # grid axis of the attention kernel, so the kernel only ever touches
        # clean (N, Dh) tiles — no sub-128-lane slicing inside the kernel.
        def split_heads(t):
            return t.reshape(B, N, H, Dh).transpose(0, 2, 1, 3)   # (B, H, N, Dh)

        q, k, v = split_heads(q2d), split_heads(k2d), split_heads(v2d)

        # 2) attention core. attn_drop: p=0 -> identity.
        ctx = _pallas_attention(q, k, v, self.scale)               # (B, H, N, Dh)
        ctx2d = ctx.transpose(0, 2, 1, 3).reshape(B * N, C)        # (B*N, C) bf16

        # 3) output projection (+bias). proj_drop: p=0 -> identity.
        out = _pallas_linear_bias(ctx2d, self.w_proj, self.b_proj,
                                  out_dtype=x.dtype)
        return out.reshape(B, N, C)


# ----------------------------- reference check ------------------------------

def _reference(attn: AttentionPallas, x):
    """Pure-JAX reference with matching bf16-matmul / f32-accumulate numerics."""
    B, N, C = x.shape
    H = attn.num_heads
    Dh = C // H
    mm = functools.partial(jnp.dot, preferred_element_type=jnp.float32)

    xb = x.reshape(B * N, C).astype(jnp.bfloat16)
    q = (mm(xb, attn.w_q) + attn.b_qkv[0]).astype(jnp.bfloat16)
    k = (mm(xb, attn.w_k) + attn.b_qkv[1]).astype(jnp.bfloat16)
    v = (mm(xb, attn.w_v) + attn.b_qkv[2]).astype(jnp.bfloat16)
    q = q.reshape(B, N, H, Dh).transpose(0, 2, 1, 3)
    k = k.reshape(B, N, H, Dh).transpose(0, 2, 1, 3)
    v = v.reshape(B, N, H, Dh).transpose(0, 2, 1, 3)

    s = jnp.einsum("bhnd,bhmd->bhnm", q, k,
                   preferred_element_type=jnp.float32) * attn.scale
    p = jax.nn.softmax(s, axis=-1)
    ctx = jnp.einsum("bhnm,bhmd->bhnd", p.astype(jnp.bfloat16), v,
                     preferred_element_type=jnp.float32)
    ctx = ctx.astype(jnp.bfloat16).transpose(0, 2, 1, 3).reshape(B * N, C)
    out = mm(ctx, attn.w_proj) + attn.b_proj
    return out.reshape(B, N, C).astype(x.dtype)


if __name__ == "__main__":
    key = jax.random.PRNGKey(0)
    kx, kp = jax.random.split(key)

    B, N, C = 2, 8, 32          # batch=2, seq=8, hidden=32, heads=8 -> head_dim=4
    x = jax.random.normal(kx, (B, N, C), dtype=jnp.float32)

    attn = AttentionPallas(dim=C, num_heads=8, qkv_bias=True, key=kp)

    out = jax.block_until_ready(attn(x))
    ref = _reference(attn, x)

    assert out.shape == (B, N, C)
    assert jnp.allclose(out, ref, atol=2e-2, rtol=2e-2), "mismatch vs reference"

    print("KERNEL_OK")
</pallas_src>

<mosaic_0001>
module attributes {stable_mosaic.version = 11 : i64} {
  func.func @_fused_qkv_kernel(%arg0: i32, %arg1: memref<16x32xbf16, #tpu.memory_space<vmem>>, %arg2: memref<32x32xbf16, #tpu.memory_space<vmem>>, %arg3: memref<32x32xbf16, #tpu.memory_space<vmem>>, %arg4: memref<32x32xbf16, #tpu.memory_space<vmem>>, %arg5: memref<3x32xf32, #tpu.memory_space<vmem>>, %arg6: memref<16x32xbf16, #tpu.memory_space<vmem>>, %arg7: memref<16x32xbf16, #tpu.memory_space<vmem>>, %arg8: memref<16x32xbf16, #tpu.memory_space<vmem>>) attributes {dimension_semantics = [#tpu.dimension_semantics<parallel>], iteration_bounds = array<i64: 1>, scalar_prefetch = 0 : i64, scratch_operands = 0 : i64, tpu.core_type = #tpu.core_type<tc>, window_params = [{transform_indices = @transform_0, window_bounds = array<i64: 16, 32>}, {pipeline_mode = #tpu.pipeline_mode<synchronous>, transform_indices = @transform_1, window_bounds = array<i64: 32, 32>}, {pipeline_mode = #tpu.pipeline_mode<synchronous>, transform_indices = @transform_2, window_bounds = array<i64: 32, 32>}, {pipeline_mode = #tpu.pipeline_mode<synchronous>, transform_indices = @transform_3, window_bounds = array<i64: 32, 32>}, {pipeline_mode = #tpu.pipeline_mode<synchronous>, transform_indices = @transform_4, window_bounds = array<i64: 3, 32>}, {transform_indices = @transform_5, window_bounds = array<i64: 16, 32>}, {transform_indices = @transform_6, window_bounds = array<i64: 16, 32>}, {transform_indices = @transform_7, window_bounds = array<i64: 16, 32>}]} {
    %c0 = arith.constant 0 : index
    %c0_0 = arith.constant 0 : index
    %0 = vector.load %arg1[%c0, %c0_0] : memref<16x32xbf16, #tpu.memory_space<vmem>>, vector<16x32xbf16>
    %c0_1 = arith.constant 0 : index
    %c0_2 = arith.constant 0 : index
    %1 = vector.load %arg5[%c0_1, %c0_2] : memref<3x32xf32, #tpu.memory_space<vmem>>, vector<3x32xf32>
    %c0_3 = arith.constant 0 : index
    %c0_4 = arith.constant 0 : index
    %2 = vector.load %arg2[%c0_3, %c0_4] : memref<32x32xbf16, #tpu.memory_space<vmem>>, vector<32x32xbf16>
    %cst = arith.constant dense<0.000000e+00> : vector<16x32xf32>
    %3 = tpu.matmul %0, %2, %cst {dimension_numbers = #tpu.dot_dimension_numbers<[1], [0], [0], [1], [0, 0, 1, 1], [], []>} : vector<16x32xbf16>, vector<32x32xbf16>, vector<16x32xf32> -> vector<16x32xf32>
    %4 = vector.extract_strided_slice %1 {offsets = [0, 0], sizes = [1, 32], strides = [1, 1]} : vector<3x32xf32> to vector<1x32xf32>
    %5 = vector.broadcast %4 : vector<1x32xf32> to vector<16x32xf32>
    %6 = arith.addf %3, %5 : vector<16x32xf32>
    %7 = arith.truncf %6 : vector<16x32xf32> to vector<16x32xbf16>
    %c0_5 = arith.constant 0 : index
    %c0_6 = arith.constant 0 : index
    %8 = vector.load %arg6[%c0_5, %c0_6] : memref<16x32xbf16, #tpu.memory_space<vmem>>, vector<16x32xbf16>
    tpu.vector_store %arg6[%c0_5, %c0_6], %7 {strides = array<i32>} : memref<16x32xbf16, #tpu.memory_space<vmem>>, vector<16x32xbf16>,
    %c0_7 = arith.constant 0 : index
    %c0_8 = arith.constant 0 : index
    %9 = vector.load %arg3[%c0_7, %c0_8] : memref<32x32xbf16, #tpu.memory_space<vmem>>, vector<32x32xbf16>
    %cst_9 = arith.constant dense<0.000000e+00> : vector<16x32xf32>
    %10 = tpu.matmul %0, %9, %cst_9 {dimension_numbers = #tpu.dot_dimension_numbers<[1], [0], [0], [1], [0, 0, 1, 1], [], []>} : vector<16x32xbf16>, vector<32x32xbf16>, vector<16x32xf32> -> vector<16x32xf32>
    %11 = vector.extract_strided_slice %1 {offsets = [1, 0], sizes = [1, 32], strides = [1, 1]} : vector<3x32xf32> to vector<1x32xf32>
    %12 = vector.broadcast %11 : vector<1x32xf32> to vector<16x32xf32>
    %13 = arith.addf %10, %12 : vector<16x32xf32>
    %14 = arith.truncf %13 : vector<16x32xf32> to vector<16x32xbf16>
    %c0_10 = arith.constant 0 : index
    %c0_11 = arith.constant 0 : index
    %15 = vector.load %arg7[%c0_10, %c0_11] : memref<16x32xbf16, #tpu.memory_space<vmem>>, vector<16x32xbf16>
    tpu.vector_store %arg7[%c0_10, %c0_11], %14 {strides = array<i32>} : memref<16x32xbf16, #tpu.memory_space<vmem>>, vector<16x32xbf16>,
    %c0_12 = arith.constant 0 : index
    %c0_13 = arith.constant 0 : index
    %16 = vector.load %arg4[%c0_12, %c0_13] : memref<32x32xbf16, #tpu.memory_space<vmem>>, vector<32x32xbf16>
    %cst_14 = arith.constant dense<0.000000e+00> : vector<16x32xf32>
    %17 = tpu.matmul %0, %16, %cst_14 {dimension_numbers = #tpu.dot_dimension_numbers<[1], [0], [0], [1], [0, 0, 1, 1], [], []>} : vector<16x32xbf16>, vector<32x32xbf16>, vector<16x32xf32> -> vector<16x32xf32>
    %18 = vector.extract_strided_slice %1 {offsets = [2, 0], sizes = [1, 32], strides = [1, 1]} : vector<3x32xf32> to vector<1x32xf32>
    %19 = vector.broadcast %18 : vector<1x32xf32> to vector<16x32xf32>
    %20 = arith.addf %17, %19 : vector<16x32xf32>
    %21 = arith.truncf %20 : vector<16x32xf32> to vector<16x32xbf16>
    %c0_15 = arith.constant 0 : index
    %c0_16 = arith.constant 0 : index
    %22 = vector.load %arg8[%c0_15, %c0_16] : memref<16x32xbf16, #tpu.memory_space<vmem>>, vector<16x32xbf16>
    tpu.vector_store %arg8[%c0_15, %c0_16], %21 {strides = array<i32>} : memref<16x32xbf16, #tpu.memory_space<vmem>>, vector<16x32xbf16>,
    return
  }
  func.func @transform_0(%arg0: i32) -> (i32, i32) {
    %c0_i32 = arith.constant 0 : i32
    %c0_i32_0 = arith.constant 0 : i32
    return %arg0, %c0_i32 : i32, i32
  }
  func.func @transform_1(%arg0: i32) -> (i32, i32) {
    %c0_i32 = arith.constant 0 : i32
    %c0_i32_0 = arith.constant 0 : i32
    %c0_i32_1 = arith.constant 0 : i32
    return %c0_i32, %c0_i32_0 : i32, i32
  }
  func.func @transform_2(%arg0: i32) -> (i32, i32) {
    %c0_i32 = arith.constant 0 : i32
    %c0_i32_0 = arith.constant 0 : i32
    %c0_i32_1 = arith.constant 0 : i32
    return %c0_i32, %c0_i32_0 : i32, i32
  }
  func.func @transform_3(%arg0: i32) -> (i32, i32) {
    %c0_i32 = arith.constant 0 : i32
    %c0_i32_0 = arith.constant 0 : i32
    %c0_i32_1 = arith.constant 0 : i32
    return %c0_i32, %c0_i32_0 : i32, i32
  }
  func.func @transform_4(%arg0: i32) -> (i32, i32) {
    %c0_i32 = arith.constant 0 : i32
    %c0_i32_0 = arith.constant 0 : i32
    %c0_i32_1 = arith.constant 0 : i32
    return %c0_i32, %c0_i32_0 : i32, i32
  }
  func.func @transform_5(%arg0: i32) -> (i32, i32) {
    %c0_i32 = arith.constant 0 : i32
    %c0_i32_0 = arith.constant 0 : i32
    return %arg0, %c0_i32 : i32, i32
  }
  func.func @transform_6(%arg0: i32) -> (i32, i32) {
    %c0_i32 = arith.constant 0 : i32
    %c0_i32_0 = arith.constant 0 : i32
    return %arg0, %c0_i32 : i32, i32
  }
  func.func @transform_7(%arg0: i32) -> (i32, i32) {
    %c0_i32 = arith.constant 0 : i32
    %c0_i32_0 = arith.constant 0 : i32
    return %arg0, %c0_i32 : i32, i32
  }
}

</mosaic_0001>

<llo_original>
// kernel: tpu_custom_call.1
$region0: #{tpu_custom_call.1}
  #allocation0 [shape = 'u32[]', space=smem, size = 0x4, offset = 0x4, fixed_abs, tag = 'smem constant byte address 0x4 - core index']
  #allocation1 [shape = 'u32[144,128]{1,0:T(1,128)}', space=vmem, size = 0x12000, scoped, tag = 'internal scratch']
  %s0 = inlined_call_operand.hbm [shape: bf16[16,32], index: 0, kind: input, shape index: {}]
  %s1 = inlined_call_operand.hbm [shape: bf16[32,32], index: 1, kind: input, shape index: {}]
  %s2 = inlined_call_operand.hbm [shape: bf16[32,32], index: 2, kind: input, shape index: {}]
  %s3 = inlined_call_operand.hbm [shape: bf16[32,32], index: 3, kind: input, shape index: {}]
  %s4 = inlined_call_operand.vmem [shape: f32[3,32], index: 4, kind: input, shape index: {}]
  %s5 = inlined_call_operand.hbm [shape: bf16[16,32], index: 5, kind: output, shape index: {0}]
  %s6 = inlined_call_operand.hbm [shape: bf16[16,32], index: 6, kind: output, shape index: {1}]
  %s7 = inlined_call_operand.hbm [shape: bf16[16,32], index: 7, kind: output, shape index: {2}]
  %8 = xla_tuple %s5, %s6, %s7
  %s9 = sld [smem:[#allocation0]]
  $region62: #{tpu_custom_call.1} parent=0
    _
  %s11 = ssub.s32 1, %s9
  %s12 = scalar_select 0, %s11, %s9
  $region1: #{tpu_custom_call.1} parent=0
    #allocation2 [shape = 'u8[4096]{0}', space=vmem, size = 0x1000, scoped, tag = 'input window, operand 0, single buffered']
    #allocation3 [shape = 's32[1]{0}', space=sflag, size = 0x4, scoped, tag = 'scoped memory for tpu_custom_call.1']
    #allocation4 [shape = 's32[1]{0}', space=sflag, size = 0x4, scoped, tag = 'scoped memory for tpu_custom_call.1']
    #allocation5 [shape = 'u8[8192]{0}', space=vmem, size = 0x2000, scoped, tag = 'input window, operand 1, single buffered']
    #allocation6 [shape = 's32[1]{0}', space=sflag, size = 0x4, scoped, tag = 'scoped memory for tpu_custom_call.1']
    #allocation7 [shape = 'u8[8192]{0}', space=vmem, size = 0x2000, scoped, tag = 'input window, operand 2, single buffered']
    #allocation8 [shape = 'u8[8192]{0}', space=vmem, size = 0x2000, scoped, tag = 'input window, operand 3, single buffered']
    #allocation9 [shape = 's32[1]{0}', space=sflag, size = 0x4, scoped, tag = 'scoped memory for tpu_custom_call.1']
    #allocation10 [shape = 'u8[4096]{0}', space=vmem, size = 0x1000, scoped, tag = 'output window, operand 0, single buffered']
    #allocation11 [shape = 'u8[4096]{0}', space=vmem, size = 0x1000, scoped, tag = 'output window, operand 1, single buffered']
    #allocation12 [shape = 's32[1]{0}', space=sflag, size = 0x4, scoped, tag = 'scoped memory for tpu_custom_call.1']
    #allocation13 [shape = 'u8[4096]{0}', space=vmem, size = 0x1000, scoped, tag = 'output window, operand 2, single buffered']
    %13 = vsyncpa [#allocation3], 0
    %14 = vsyncpa [#allocation6], 0
    %15 = vsyncpa [#allocation9], 0
    %16 = vsyncpa [#allocation4], 0
    %17 = vsyncpa [#allocation12], 0
    // Predicated region
    $region2: #{tpu_custom_call.1} parent=1 // pred_check
      _
    $region3: #{tpu_custom_call.1} parent=1 // pred_check_branch
      %19 = sbr.rel (0) target = $region5
    $region4: #{tpu_custom_call.1} parent=1 // pred_region
      %s21 = ssub.s32 128, 128
      %22 = vsyncadd [#allocation3], %s21
      %s23 = sshll.u32 [#allocation2], 4
      %s24 = int_to_ptr.vmem [resolvable:$true] %s23
      %29 = dma.hbm_to_vmem [thread:$0]  %s0, 128, %s24, [#allocation3], 64, 64, 4
    $region5: #{tpu_custom_call.1} parent=1 // pred_fallthru
      _
    // Predicated region
    $region6: #{tpu_custom_call.1} parent=1 // pred_check
      _
    $region7: #{tpu_custom_call.1} parent=1 // pred_check_branch
      %31 = sbr.rel (0) target = $region9
    $region8: #{tpu_custom_call.1} parent=1 // pred_region
      %s33 = ssub.s32 256, 256
      %34 = vsyncadd [#allocation6], %s33
      %s35 = sshll.u32 [#allocation5], 4
      %s36 = int_to_ptr.vmem [resolvable:$true] %s35
      %41 = dma.hbm_to_vmem [thread:$0]  %s1, 256, %s36, [#allocation6], 64, 64, 4
    $region9: #{tpu_custom_call.1} parent=1 // pred_fallthru
      _
    // Predicated region
    $region10: #{tpu_custom_call.1} parent=1 // pred_check
      _
    $region11: #{tpu_custom_call.1} parent=1 // pred_check_branch
      %43 = sbr.rel (0) target = $region13
    $region12: #{tpu_custom_call.1} parent=1 // pred_region
      %s45 = ssub.s32 256, 256
      %46 = vsyncadd [#allocation6], %s45
      %s47 = sshll.u32 [#allocation7], 4
      %s48 = int_to_ptr.vmem [resolvable:$true] %s47
      %53 = dma.hbm_to_vmem [thread:$0]  %s2, 256, %s48, [#allocation6], 64, 64, 4
    $region13: #{tpu_custom_call.1} parent=1 // pred_fallthru
      _
    // Predicated region
    $region14: #{tpu_custom_call.1} parent=1 // pred_check
      _
    $region15: #{tpu_custom_call.1} parent=1 // pred_check_branch
      %55 = sbr.rel (0) target = $region17
    $region16: #{tpu_custom_call.1} parent=1 // pred_region
      %s57 = ssub.s32 256, 256
      %58 = vsyncadd [#allocation9], %s57
      %s59 = sshll.u32 [#allocation8], 4
      %s60 = int_to_ptr.vmem [resolvable:$true] %s59
      %65 = dma.hbm_to_vmem [thread:$0]  %s3, 256, %s60, [#allocation9], 64, 64, 4
    $region17: #{tpu_custom_call.1} parent=1 // pred_fallthru
      _
    // Predicated region
    $region18: #{tpu_custom_call.1} parent=1 // pred_check
      _
    $region19: #{tpu_custom_call.1} parent=1 // pred_check_branch
      %67 = sbr.rel (0) target = $region21
    $region20: #{tpu_custom_call.1} parent=1 // pred_region
      _
    $region21: #{tpu_custom_call.1} parent=1 // pred_fallthru
      _
    // Predicated region
    $region22: #{tpu_custom_call.1} parent=1 // pred_check
      _
    $region23: #{tpu_custom_call.1} parent=1 // pred_check_branch
      %69 = sbr.rel (0) target = $region25
    $region24: #{tpu_custom_call.1} parent=1 // pred_region
      %70 = dma.done [#allocation3], 128
    $region25: #{tpu_custom_call.1} parent=1 // pred_fallthru
      _
    // Predicated region
    $region26: #{tpu_custom_call.1} parent=1 // pred_check
      _
    $region27: #{tpu_custom_call.1} parent=1 // pred_check_branch
      %72 = sbr.rel (0) target = $region29
    $region28: #{tpu_custom_call.1} parent=1 // pred_region
      %73 = dma.done [#allocation6], 256
    $region29: #{tpu_custom_call.1} parent=1 // pred_fallthru
      _
    // Predicated region
    $region30: #{tpu_custom_call.1} parent=1 // pred_check
      _
    $region31: #{tpu_custom_call.1} parent=1 // pred_check_branch
      %75 = sbr.rel (0) target = $region33
    $region32: #{tpu_custom_call.1} parent=1 // pred_region
      %76 = dma.done [#allocation6], 256
    $region33: #{tpu_custom_call.1} parent=1 // pred_fallthru
      _
    // Predicated region
    $region34: #{tpu_custom_call.1} parent=1 // pred_check
      _
    $region35: #{tpu_custom_call.1} parent=1 // pred_check_branch
      %78 = sbr.rel (0) target = $region37
    $region36: #{tpu_custom_call.1} parent=1 // pred_region
      %79 = dma.done [#allocation9], 256
    $region37: #{tpu_custom_call.1} parent=1 // pred_fallthru
      _
    %v81 = vld [vmem:[#allocation2] sm:$0xf]
    %v82 = vld [vmem:[#allocation2 + $0x4] sm:$0xf]
    %v83 = vld [vmem:[%s4] sm:$0x7]
    %v84 = vld [vmem:[#allocation5] sm:$0xf]
    %v85 = vld [vmem:[#allocation5 + $0x4] sm:$0xf]
    %v86 = vld [vmem:[#allocation5 + $0x8] sm:$0xf]
    %v87 = vld [vmem:[#allocation5 + $0xc] sm:$0xf]
    %v88 = vlaneseq
    %v89 = vshrl.u32 %v88, 7
    %v90 = vsub.s32 0, %v89
    %v91 = vrot.slane %v83, %v90
    %v94 = vunpack.c.l.b16 %v81
    %v95 = vunpack.c.l.b16 %v82
    %v96 = vpack.c.b16 %v95, %v94
    %v101 = vunpack.c.l.b16 %v84
    %v102 = vunpack.c.l.b16 %v85
    %v103 = vunpack.c.l.b16 %v86
    %v104 = vunpack.c.l.b16 %v87
    %v105 = vpack.c.b16 %v102, %v101
    %v106 = vpack.c.b16 %v104, %v103
    %vm109 = vcmask 261120
    %v111 = vsel %vm109, %v96, 0
    %113 = vmatprep.subr.bf16.mxu0 0
    %114 = vmatpush1.bf16.msra.mxu0 %v105
    %115 = vmatprep.subr.bf16.mxu0 0
    %116 = vmatpush1.bf16.msra.mxu0 %v106
    %117 = vmatprep.subr.bf16.mxu0 0
    %118 = vmatpush1.bf16.msra.mxu0 0
    %119 = vmatprep.subr.bf16.mxu0 0
    %120 = vmatpush1.bf16.msra.mxu0 0
    %121 = vmatprep.subr.bf16.mxu0 0
    %122 = vmatpush1.bf16.msra.mxu0 0
    %123 = vmatprep.subr.bf16.mxu0 0
    %124 = vmatpush1.bf16.msra.mxu0 0
    %125 = vmatprep.subr.bf16.mxu0 0
    %126 = vmatpush1.bf16.msra.mxu0 0
    %127 = vmatprep.subr.bf16.mxu0 0
    %128 = vmatpush1.bf16.msra.mxu0 0
    %129 = vmatprep.subr.bf16.mxu0 0
    %130 = vmatpush1.bf16.msra.mxu0 0
    %131 = vmatprep.subr.bf16.mxu0 0
    %132 = vmatpush1.bf16.msra.mxu0 0
    %133 = vmatprep.subr.bf16.mxu0 0
    %134 = vmatpush1.bf16.msra.mxu0 0
    %135 = vmatprep.subr.bf16.mxu0 0
    %136 = vmatpush1.bf16.msra.mxu0 0
    %137 = vmatprep.subr.bf16.mxu0 0
    %138 = vmatpush1.bf16.msra.mxu0 0
    %139 = vmatprep.subr.bf16.mxu0 0
    %140 = vmatpush1.bf16.msra.mxu0 0
    %141 = vmatprep.subr.bf16.mxu0 0
    %142 = vmatpush1.bf16.msra.mxu0 0
    %143 = vmatprep.subr.bf16.mxu0 0
    %144 = vmatpush1.bf16.msra.mxu0 0
    %145 = vmatprep.mubr.bf16.mxu0 0
    %146 = vmatmul.mubr.bf16.gmra.mrb[0].mxu0 %v111
    %v147 = vpop.f32.mrb[0].mxu0
    %v148 = vadd.f32 %v91, %v147
    %v149 = vpop.f32.mrb[0].mxu0
    %v150 = vpop.f32.mrb[0].mxu0
    %v151 = vadd.f32 %v91, %v150
    %v152 = vpop.f32.mrb[0].mxu0
    %153 = vdwg.mxu0
    %v154 = vpack.c.bf16 %v151, %v148
    %v156 = vunpack.c.l.b16 %v154
    %v157 = vunpack.c.h.b16 %v154
    %v158 = vpack.c.b16 %v156, %v156
    %v159 = vpack.c.b16 %v157, %v157
    %vm162 = vcmask 257024
    %163 = vst.msk [vmem:[#allocation10] sm:$0xf] %vm162, %v158
    %164 = vst.msk [vmem:[#allocation10 + $0x4] sm:$0xf] %vm162, %v159
    %v165 = vld [vmem:[#allocation7] sm:$0xf]
    %v166 = vld [vmem:[#allocation7 + $0x4] sm:$0xf]
    %v167 = vld [vmem:[#allocation7 + $0x8] sm:$0xf]
    %v168 = vld [vmem:[#allocation7 + $0xc] sm:$0xf]
    %v169 = vlaneseq
    %v170 = vshrl.u32 %v169, 7
    %v171 = vsub.s32 1, %v170
    %v172 = vrot.slane %v83, %v171
    %v177 = vunpack.c.l.b16 %v165
    %v178 = vunpack.c.l.b16 %v166
    %v179 = vunpack.c.l.b16 %v167
    %v180 = vunpack.c.l.b16 %v168
    %v181 = vpack.c.b16 %v178, %v177
    %v182 = vpack.c.b16 %v180, %v179
    %185 = vmatprep.subr.bf16.mxu0 0
    %186 = vmatpush1.bf16.msra.mxu0 %v181
    %187 = vmatprep.subr.bf16.mxu0 0
    %188 = vmatpush1.bf16.msra.mxu0 %v182
    %189 = vmatprep.subr.bf16.mxu0 0
    %190 = vmatpush1.bf16.msra.mxu0 0
    %191 = vmatprep.subr.bf16.mxu0 0
    %192 = vmatpush1.bf16.msra.mxu0 0
    %193 = vmatprep.subr.bf16.mxu0 0
    %194 = vmatpush1.bf16.msra.mxu0 0
    %195 = vmatprep.subr.bf16.mxu0 0
    %196 = vmatpush1.bf16.msra.mxu0 0
    %197 = vmatprep.subr.bf16.mxu0 0
    %198 = vmatpush1.bf16.msra.mxu0 0
    %199 = vmatprep.subr.bf16.mxu0 0
    %200 = vmatpush1.bf16.msra.mxu0 0
    %201 = vmatprep.subr.bf16.mxu0 0
    %202 = vmatpush1.bf16.msra.mxu0 0
    %203 = vmatprep.subr.bf16.mxu0 0
    %204 = vmatpush1.bf16.msra.mxu0 0
    %205 = vmatprep.subr.bf16.mxu0 0
    %206 = vmatpush1.bf16.msra.mxu0 0
    %207 = vmatprep.subr.bf16.mxu0 0
    %208 = vmatpush1.bf16.msra.mxu0 0
    %209 = vmatprep.subr.bf16.mxu0 0
    %210 = vmatpush1.bf16.msra.mxu0 0
    %211 = vmatprep.subr.bf16.mxu0 0
    %212 = vmatpush1.bf16.msra.mxu0 0
    %213 = vmatprep.subr.bf16.mxu0 0
    %214 = vmatpush1.bf16.msra.mxu0 0
    %215 = vmatprep.subr.bf16.mxu0 0
    %216 = vmatpush1.bf16.msra.mxu0 0
    %217 = vmatprep.mubr.bf16.mxu0 0
    %218 = vmatmul.mubr.bf16.gmra.mrb[0].mxu0 %v111
    %v219 = vpop.f32.mrb[0].mxu0
    %v220 = vadd.f32 %v172, %v219
    %v221 = vpop.f32.mrb[0].mxu0
    %v222 = vpop.f32.mrb[0].mxu0
    %v223 = vadd.f32 %v172, %v222
    %v224 = vpop.f32.mrb[0].mxu0
    %225 = vdwg.mxu0
    %v226 = vpack.c.bf16 %v223, %v220
    %v228 = vunpack.c.l.b16 %v226
    %v229 = vunpack.c.h.b16 %v226
    %v230 = vpack.c.b16 %v228, %v228
    %v231 = vpack.c.b16 %v229, %v229
    %234 = vst.msk [vmem:[#allocation11] sm:$0xf] %vm162, %v230
    %235 = vst.msk [vmem:[#allocation11 + $0x4] sm:$0xf] %vm162, %v231
    %v236 = vld [vmem:[#allocation8] sm:$0xf]
    %v237 = vld [vmem:[#allocation8 + $0x4] sm:$0xf]
    %v238 = vld [vmem:[#allocation8 + $0x8] sm:$0xf]
    %v239 = vld [vmem:[#allocation8 + $0xc] sm:$0xf]
    %v240 = vlaneseq
    %v241 = vshrl.u32 %v240, 7
    %v242 = vsub.s32 2, %v241
    %v243 = vrot.slane %v83, %v242
    %v248 = vunpack.c.l.b16 %v236
    %v249 = vunpack.c.l.b16 %v237
    %v250 = vunpack.c.l.b16 %v238
    %v251 = vunpack.c.l.b16 %v239
    %v252 = vpack.c.b16 %v249, %v248
    %v253 = vpack.c.b16 %v251, %v250
    %256 = vmatprep.subr.bf16.mxu0 0
    %257 = vmatpush1.bf16.msra.mxu0 %v252
    %258 = vmatprep.subr.bf16.mxu0 0
    %259 = vmatpush1.bf16.msra.mxu0 %v253
    %260 = vmatprep.subr.bf16.mxu0 0
    %261 = vmatpush1.bf16.msra.mxu0 0
    %262 = vmatprep.subr.bf16.mxu0 0
    %263 = vmatpush1.bf16.msra.mxu0 0
    %264 = vmatprep.subr.bf16.mxu0 0
    %265 = vmatpush1.bf16.msra.mxu0 0
    %266 = vmatprep.subr.bf16.mxu0 0
    %267 = vmatpush1.bf16.msra.mxu0 0
    %268 = vmatprep.subr.bf16.mxu0 0
    %269 = vmatpush1.bf16.msra.mxu0 0
    %270 = vmatprep.subr.bf16.mxu0 0
    %271 = vmatpush1.bf16.msra.mxu0 0
    %272 = vmatprep.subr.bf16.mxu0 0
    %273 = vmatpush1.bf16.msra.mxu0 0
    %274 = vmatprep.subr.bf16.mxu0 0
    %275 = vmatpush1.bf16.msra.mxu0 0
    %276 = vmatprep.subr.bf16.mxu0 0
    %277 = vmatpush1.bf16.msra.mxu0 0
    %278 = vmatprep.subr.bf16.mxu0 0
    %279 = vmatpush1.bf16.msra.mxu0 0
    %280 = vmatprep.subr.bf16.mxu0 0
    %281 = vmatpush1.bf16.msra.mxu0 0
    %282 = vmatprep.subr.bf16.mxu0 0
    %283 = vmatpush1.bf16.msra.mxu0 0
    %284 = vmatprep.subr.bf16.mxu0 0
    %285 = vmatpush1.bf16.msra.mxu0 0
    %286 = vmatprep.subr.bf16.mxu0 0
    %287 = vmatpush1.bf16.msra.mxu0 0
    %288 = vmatprep.mubr.bf16.mxu0 0
    %289 = vmatmul.mubr.bf16.gmra.mrb[0].mxu0 %v111
    %v290 = vpop.f32.mrb[0].mxu0
    %v291 = vadd.f32 %v243, %v290
    %v292 = vpop.f32.mrb[0].mxu0
    %v293 = vpop.f32.mrb[0].mxu0
    %v294 = vadd.f32 %v243, %v293
    %v295 = vpop.f32.mrb[0].mxu0
    %296 = vdwg.mxu0
    %v297 = vpack.c.bf16 %v294, %v291
    %v299 = vunpack.c.l.b16 %v297
    %v300 = vunpack.c.h.b16 %v297
    %v301 = vpack.c.b16 %v299, %v299
    %v302 = vpack.c.b16 %v300, %v300
    %305 = vst.msk [vmem:[#allocation13] sm:$0xf] %vm162, %v301
    %306 = vst.msk [vmem:[#allocation13 + $0x4] sm:$0xf] %vm162, %v302
    // Predicated region
    $region38: #{tpu_custom_call.1} parent=1 // pred_check
      _
    $region39: #{tpu_custom_call.1} parent=1 // pred_check_branch
      %308 = sbr.rel (0) target = $region41
    $region40: #{tpu_custom_call.1} parent=1 // pred_region
      %s310 = ssub.s32 128, 128
      %311 = vsyncadd [#allocation4], %s310
      %s312 = sshll.u32 [#allocation10], 4
      %s313 = int_to_ptr.vmem [resolvable:$true] %s312
      %318 = dma.vmem_to_hbm [thread:$0]  %s313, 128, %s5, [#allocation4], 64, 64, 4
    $region41: #{tpu_custom_call.1} parent=1 // pred_fallthru
      _
    // Predicated region
    $region42: #{tpu_custom_call.1} parent=1 // pred_check
      _
    $region43: #{tpu_custom_call.1} parent=1 // pred_check_branch
      %320 = sbr.rel (0) target = $region45
    $region44: #{tpu_custom_call.1} parent=1 // pred_region
      %s322 = ssub.s32 128, 128
      %323 = vsyncadd [#allocation12], %s322
      %s324 = sshll.u32 [#allocation11], 4
      %s325 = int_to_ptr.vmem [resolvable:$true] %s324
      %330 = dma.vmem_to_hbm [thread:$0]  %s325, 128, %s6, [#allocation12], 64, 64, 4
    $region45: #{tpu_custom_call.1} parent=1 // pred_fallthru
      _
    // Predicated region
    $region46: #{tpu_custom_call.1} parent=1 // pred_check
      _
    $region47: #{tpu_custom_call.1} parent=1 // pred_check_branch
      %332 = sbr.rel (0) target = $region49
    $region48: #{tpu_custom_call.1} parent=1 // pred_region
      %s334 = ssub.s32 128, 128
      %335 = vsyncadd [#allocation12], %s334
      %s336 = sshll.u32 [#allocation13], 4
      %s337 = int_to_ptr.vmem [resolvable:$true] %s336
      %342 = dma.vmem_to_hbm [thread:$0]  %s337, 128, %s7, [#allocation12], 64, 64, 4
    $region49: #{tpu_custom_call.1} parent=1 // pred_fallthru
      _
    // Predicated region
    $region50: #{tpu_custom_call.1} parent=1 // pred_check
      _
    $region51: #{tpu_custom_call.1} parent=1 // pred_check_branch
      %344 = sbr.rel (0) target = $region53
    $region52: #{tpu_custom_call.1} parent=1 // pred_region
      %345 = dma.done [#allocation4], 128
    $region53: #{tpu_custom_call.1} parent=1 // pred_fallthru
      _
    // Predicated region
    $region54: #{tpu_custom_call.1} parent=1 // pred_check
      _
    $region55: #{tpu_custom_call.1} parent=1 // pred_check_branch
      %347 = sbr.rel (0) target = $region57
    $region56: #{tpu_custom_call.1} parent=1 // pred_region
      %348 = dma.done [#allocation12], 128
    $region57: #{tpu_custom_call.1} parent=1 // pred_fallthru
      _
    // Predicated region
    $region58: #{tpu_custom_call.1} parent=1 // pred_check
      _
    $region59: #{tpu_custom_call.1} parent=1 // pred_check_branch
      %350 = sbr.rel (0) target = $region61
    $region60: #{tpu_custom_call.1} parent=1 // pred_region
      %351 = dma.done [#allocation12], 128
    $region61: #{tpu_custom_call.1} parent=1 // pred_fallthru
      _
    %352 = vsyncpa [#allocation3], 1
    %353 = vsyncpa [#allocation6], 1
    %354 = vsyncpa [#allocation9], 1
    %355 = vsyncpa [#allocation4], 1
    %356 = vsyncpa [#allocation12], 1

</llo_original>
